<compile_context>
chip_gen: v6e
topology: v6e:2x2x1
jax: 0.10.0
libtpu: 0.0.40
codegen_flags: <defaults>
</compile_context>

<pallas_src>
import jax
import jax.numpy as jnp
from jax.experimental import pallas as pl
from jax.experimental.pallas import tpu as pltpu


LANES = 1024                 # lane-dense last dim (multiple of 128)
FAST_PATH_ELEMS = 1 << 16    # below this, plain XLA fuses the ops for free


def _rounding_kernel(w_ref, x_ref, y_ref, rw_ref, fx_ref, cy_ref):
    # Elementwise hot path on the VPU over the current VMEM tile.
    rw_ref[...] = jnp.round(w_ref[...])   # round-half-to-even == torch.round
    fx_ref[...] = jnp.floor(x_ref[...])
    cy_ref[...] = jnp.ceil(y_ref[...])


def _chip_config():
    """Returns (max_tile_rows, vmem_limit_bytes), TPU-generation aware."""
    vmem_bytes = 64 << 20  # conservative default (v7x per-TC VMEM)
    try:
        info = pltpu.get_tpu_info()
        vmem_bytes = int(getattr(info, "vmem_capacity_bytes", vmem_bytes))
    except Exception:
        pass
    if vmem_bytes >= (96 << 20):
        # v5e / v6e: 128 MiB physical VMEM -> 4 MiB tiles, 12 bufs = 48 MiB.
        return 1024, 100 << 20
    # v7x: 64 MiB per TC -> cap per-step footprint at 12 x 3 MiB = 36 MiB.
    return 768, 48 << 20


def rounding_ops(w, x, y):
    assert w.shape == x.shape == y.shape
    assert w.dtype == x.dtype == y.dtype

    orig_shape = w.shape
    dtype = w.dtype
    n = int(w.size)
    itemsize = jnp.dtype(dtype).itemsize

    # Small-input fast path: kernel launch + layout plumbing dwarf the work.
    if n < FAST_PATH_ELEMS:
        return jnp.round(w), jnp.floor(x), jnp.ceil(y)

    max_tile_rows, vmem_limit = _chip_config()

    # Flatten to a lane-dense (rows, LANES) slab. Pad only to a LANES multiple
    # (at most 1023 elements); NO tile-sized round-up — Pallas masks the
    # ragged final block itself via the cdiv grid below.
    rows = -(-n // LANES)          # cdiv
    padded_n = rows * LANES

    def prep(a):
        a = a.reshape(-1)
        if padded_n != n:
            a = jnp.pad(a, (0, padded_n - n))
        return a.reshape(rows, LANES)

    # Dtype-aware sublane packing: 8 rows for 32-bit, 16 for bf16, 32 for int8.
    sub = max(8, 32 // itemsize)
    if rows > max_tile_rows:
        tile_r = max_tile_rows               # already a multiple of `sub`
    elif rows > 2 * sub:
        # Split into >= 2 grid steps so both v7x TensorCores stream data.
        half = -(-rows // 2)
        tile_r = -(-half // sub) * sub
    else:
        tile_r = sub
    grid = (pl.cdiv(rows, tile_r),)

    spec = pl.BlockSpec((tile_r, LANES), lambda i: (i, 0))
    out_shape = tuple(
        jax.ShapeDtypeStruct((rows, LANES), dtype) for _ in range(3)
    )

    cost = pl.CostEstimate(
        flops=3 * padded_n,
        transcendentals=0,
        bytes_accessed=6 * padded_n * itemsize,
    )

    rw, fx, cy = pl.pallas_call(
        _rounding_kernel,
        out_shape=out_shape,
        grid=grid,
        in_specs=[spec, spec, spec],
        out_specs=(spec, spec, spec),
        compiler_params=pltpu.CompilerParams(
            dimension_semantics=("parallel",),
            vmem_limit_bytes=vmem_limit,
        ),
        cost_estimate=cost,
    )(prep(w), prep(x), prep(y))

    def unprep(a):
        if padded_n != n:
            return a.reshape(-1)[:n].reshape(orig_shape)
        return a.reshape(orig_shape)

    return unprep(rw), unprep(fx), unprep(cy)


if __name__ == "__main__":
    key = jax.random.PRNGKey(0)

    def run_case(shape, case_key):
        kw, kx, ky = jax.random.split(case_key, 3)
        w = jax.random.normal(kw, shape, dtype=jnp.float32) * 5.0
        x = jax.random.normal(kx, shape, dtype=jnp.float32) * 5.0
        y = jax.random.normal(ky, shape, dtype=jnp.float32) * 5.0
        rw, fx, cy = jax.block_until_ready(rounding_ops(w, x, y))
        # Correctness vs pure-JAX reference (same semantics as torch).
        assert jnp.array_equal(rw, jnp.round(w))
        assert jnp.array_equal(fx, jnp.floor(x))
        assert jnp.array_equal(cy, jnp.ceil(y))

    k1, k2, k3 = jax.random.split(key, 3)
    run_case((192, 1024), k1)   # lane-aligned, 2-step grid (Pallas path)
    run_case((3, 50, 500), k2)  # ragged: LANES pad + Pallas-masked final block
    run_case((2, 8, 128), k3)   # tiny input: XLA fast path

    print("KERNEL_OK")
</pallas_src>

<mosaic_0001>
module attributes {stable_mosaic.version = 11 : i64} {
  func.func @_rounding_kernel(%arg0: i32, %arg1: memref<96x1024xf32, #tpu.memory_space<vmem>>, %arg2: memref<96x1024xf32, #tpu.memory_space<vmem>>, %arg3: memref<96x1024xf32, #tpu.memory_space<vmem>>, %arg4: memref<96x1024xf32, #tpu.memory_space<vmem>>, %arg5: memref<96x1024xf32, #tpu.memory_space<vmem>>, %arg6: memref<96x1024xf32, #tpu.memory_space<vmem>>) attributes {dimension_semantics = [#tpu.dimension_semantics<parallel>], iteration_bounds = array<i64: 2>, scalar_prefetch = 0 : i64, scratch_operands = 0 : i64, tpu.core_type = #tpu.core_type<tc>, window_params = [{transform_indices = @transform_0, window_bounds = array<i64: 96, 1024>}, {transform_indices = @transform_1, window_bounds = array<i64: 96, 1024>}, {transform_indices = @transform_2, window_bounds = array<i64: 96, 1024>}, {transform_indices = @transform_3, window_bounds = array<i64: 96, 1024>}, {transform_indices = @transform_4, window_bounds = array<i64: 96, 1024>}, {transform_indices = @transform_5, window_bounds = array<i64: 96, 1024>}]} {
    %c0 = arith.constant 0 : index
    %c0_0 = arith.constant 0 : index
    %0 = vector.load %arg1[%c0, %c0_0] : memref<96x1024xf32, #tpu.memory_space<vmem>>, vector<96x1024xf32>
    %1 = math.roundeven %0 : vector<96x1024xf32>
    %c0_1 = arith.constant 0 : index
    %c0_2 = arith.constant 0 : index
    %2 = vector.load %arg4[%c0_1, %c0_2] : memref<96x1024xf32, #tpu.memory_space<vmem>>, vector<96x1024xf32>
    tpu.vector_store %arg4[%c0_1, %c0_2], %1 {strides = array<i32>} : memref<96x1024xf32, #tpu.memory_space<vmem>>, vector<96x1024xf32>,
    %c0_3 = arith.constant 0 : index
    %c0_4 = arith.constant 0 : index
    %3 = vector.load %arg2[%c0_3, %c0_4] : memref<96x1024xf32, #tpu.memory_space<vmem>>, vector<96x1024xf32>
    %4 = math.floor %3 : vector<96x1024xf32>
    %c0_5 = arith.constant 0 : index
    %c0_6 = arith.constant 0 : index
    %5 = vector.load %arg5[%c0_5, %c0_6] : memref<96x1024xf32, #tpu.memory_space<vmem>>, vector<96x1024xf32>
    tpu.vector_store %arg5[%c0_5, %c0_6], %4 {strides = array<i32>} : memref<96x1024xf32, #tpu.memory_space<vmem>>, vector<96x1024xf32>,
    %c0_7 = arith.constant 0 : index
    %c0_8 = arith.constant 0 : index
    %6 = vector.load %arg3[%c0_7, %c0_8] : memref<96x1024xf32, #tpu.memory_space<vmem>>, vector<96x1024xf32>
    %7 = math.ceil %6 : vector<96x1024xf32>
    %c0_9 = arith.constant 0 : index
    %c0_10 = arith.constant 0 : index
    %8 = vector.load %arg6[%c0_9, %c0_10] : memref<96x1024xf32, #tpu.memory_space<vmem>>, vector<96x1024xf32>
    tpu.vector_store %arg6[%c0_9, %c0_10], %7 {strides = array<i32>} : memref<96x1024xf32, #tpu.memory_space<vmem>>, vector<96x1024xf32>,
    return
  }
  func.func @transform_0(%arg0: i32) -> (i32, i32) {
    %c0_i32 = arith.constant 0 : i32
    %c0_i32_0 = arith.constant 0 : i32
    return %arg0, %c0_i32 : i32, i32
  }
  func.func @transform_1(%arg0: i32) -> (i32, i32) {
    %c0_i32 = arith.constant 0 : i32
    %c0_i32_0 = arith.constant 0 : i32
    return %arg0, %c0_i32 : i32, i32
  }
  func.func @transform_2(%arg0: i32) -> (i32, i32) {
    %c0_i32 = arith.constant 0 : i32
    %c0_i32_0 = arith.constant 0 : i32
    return %arg0, %c0_i32 : i32, i32
  }
  func.func @transform_3(%arg0: i32) -> (i32, i32) {
    %c0_i32 = arith.constant 0 : i32
    %c0_i32_0 = arith.constant 0 : i32
    return %arg0, %c0_i32 : i32, i32
  }
  func.func @transform_4(%arg0: i32) -> (i32, i32) {
    %c0_i32 = arith.constant 0 : i32
    %c0_i32_0 = arith.constant 0 : i32
    return %arg0, %c0_i32 : i32, i32
  }
  func.func @transform_5(%arg0: i32) -> (i32, i32) {
    %c0_i32 = arith.constant 0 : i32
    %c0_i32_0 = arith.constant 0 : i32
    return %arg0, %c0_i32 : i32, i32
  }
}

</mosaic_0001>

<llo_original>
// kernel: tpu_custom_call.1
$region0: #{tpu_custom_call.1}
  #allocation0 [shape = 'u32[]', space=smem, size = 0x4, offset = 0x4, fixed_abs, tag = 'smem constant byte address 0x4 - core index']
  #allocation1 [shape = 'u32[144,128]{1,0:T(1,128)}', space=vmem, size = 0x12000, scoped, tag = 'internal scratch']
  %s0 = inlined_call_operand.hbm [shape: f32[192,1024], index: 0, kind: input, shape index: {}]
  %s1 = inlined_call_operand.hbm [shape: f32[192,1024], index: 1, kind: input, shape index: {}]
  %s2 = inlined_call_operand.hbm [shape: f32[192,1024], index: 2, kind: input, shape index: {}]
  %s3 = inlined_call_operand.hbm [shape: f32[192,1024], index: 3, kind: output, shape index: {0}]
  %s4 = inlined_call_operand.hbm [shape: f32[192,1024], index: 4, kind: output, shape index: {1}]
  %s5 = inlined_call_operand.hbm [shape: f32[192,1024], index: 5, kind: output, shape index: {2}]
  %6 = xla_tuple %s3, %s4, %s5
  %s7 = sld [smem:[#allocation0]]
  $region73: #{tpu_custom_call.1} parent=0
    _
  %s9 = ssub.s32 1, %s7
  %s10 = scalar_select 0, %s9, %s7
  $region1: #{tpu_custom_call.1} parent=0
    #allocation2 [shape = 'u8[786432]{0}', space=vmem, size = 0xc0000, scoped, tag = 'input window, operand 0']
    #allocation3 [shape = 's32[2]{0}', space=sflag, size = 0x8, scoped, tag = 'scoped memory for tpu_custom_call.1']
    #allocation4 [shape = 's32[2]{0}', space=sflag, size = 0x8, scoped, tag = 'scoped memory for tpu_custom_call.1']
    #allocation5 [shape = 'u8[786432]{0}', space=vmem, size = 0xc0000, scoped, tag = 'input window, operand 1']
    #allocation6 [shape = 's32[2]{0}', space=sflag, size = 0x8, scoped, tag = 'scoped memory for tpu_custom_call.1']
    #allocation7 [shape = 'u8[786432]{0}', space=vmem, size = 0xc0000, scoped, tag = 'input window, operand 2']
    #allocation8 [shape = 'u8[786432]{0}', space=vmem, size = 0xc0000, scoped, tag = 'output window, operand 0']
    #allocation9 [shape = 'u8[786432]{0}', space=vmem, size = 0xc0000, scoped, tag = 'output window, operand 1']
    #allocation10 [shape = 's32[2]{0}', space=sflag, size = 0x8, scoped, tag = 'scoped memory for tpu_custom_call.1']
    #allocation11 [shape = 'u8[786432]{0}', space=vmem, size = 0xc0000, scoped, tag = 'output window, operand 2']
    %11 = vsyncpa [#allocation3], 0
    %s12 = scalar_lea.sflag [#allocation3], 1
    %13 = vsyncpa %s12, 0
    %14 = vsyncpa [#allocation6], 0
    %s15 = scalar_lea.sflag [#allocation6], 1
    %16 = vsyncpa %s15, 0
    %17 = vsyncpa [#allocation4], 0
    %s18 = scalar_lea.sflag [#allocation4], 1
    %19 = vsyncpa %s18, 0
    %20 = vsyncpa [#allocation10], 0
    %s21 = scalar_lea.sflag [#allocation10], 1
    %22 = vsyncpa %s21, 0
    loop: start=0, step=1, limit=4
    $region2: #{tpu_custom_call.1} parent=1 // loop_pre_header
      _
    $region3: #{tpu_custom_call.1} parent=1 // loop_header
      %s24 = sphi 0, %s28
      %p25 = scmp.ge.s32.totalorder %s24, 4
      %s34 = sphi 0, %s36
      %s37 = sphi 0, %s34
      %s38 = sphi 0, %s37
      %s54 = sphi 0, %s38
      %s60 = sphi 0, %s62
      %s63 = sphi 0, %s60
      %s64 = sphi 0, %s63
      %s80 = sphi 0, %s64
      %s86 = sphi 0, %s88
      %s89 = sphi 0, %s86
      %s90 = sphi 0, %s89
      %s106 = sphi 0, %s90
      %s112 = sphi 0, %s114
      %s115 = sphi 0, %s112
      %s116 = sphi 0, %s115
      %s132 = sphi 0, %s116
      %s138 = sphi 0, %s140
      %s141 = sphi 0, %s138
      %s142 = sphi 0, %s141
      %s158 = sphi 0, %s142
      %s164 = sphi 0, %s166
      %s167 = sphi 0, %s164
      %s168 = sphi 0, %s167
      %s184 = sphi 0, %s168
    $region4: #{tpu_custom_call.1} parent=1 // loop_header_branch
      %27 = sbr.rel (%p25) target = $region8
    $region5: #{tpu_custom_call.1} parent=1 // loop_body
      %s29 = ssub.s32 %s24, 1
      %s30 = ssub.s32 %s24, 2
      %s31 = sadd.s32 %s24, 1
      %s32 = ssub.s32 %s24, %s31
      %p33 = scmp.eq.s32.totalorder %s32, 0
      %s35 = sadd.s32 %s34, 1
      %s36 = scalar_select %p33, %s34, %s35
      %p39 = pneg %p33
      %p40 = scmp.eq.s32.totalorder %s24, 1
      %p41 = por %p39, %p40
      %p42 = scmp.ne.s32.totalorder %s34, %s37
      %p43 = scmp.eq.s32.totalorder %s24, 0
      %p44 = por %p42, %p43
      %p45 = scmp.ne.s32.totalorder %s34, %s37
      %p46 = scmp.eq.s32.totalorder %s29, 1
      %p47 = por %p45, %p46
      %p48 = scmp.ne.s32.totalorder %s37, %s38
      %p49 = scmp.eq.s32.totalorder %s29, 0
      %p50 = por %p48, %p49
      %p51 = scmp.ne.s32.totalorder %s37, %s38
      %p52 = scmp.eq.s32.totalorder %s30, 1
      %p53 = por %p51, %p52
      %p55 = scmp.ne.s32.totalorder %s38, %s54
      %p56 = scmp.eq.s32.totalorder %s30, 0
      %p57 = por %p55, %p56
      %s58 = ssub.s32 %s24, %s31
      %p59 = scmp.eq.s32.totalorder %s58, 0
      %s61 = sadd.s32 %s60, 1
      %s62 = scalar_select %p59, %s60, %s61
      %p65 = pneg %p59
      %p66 = scmp.eq.s32.totalorder %s24, 1
      %p67 = por %p65, %p66
      %p68 = scmp.ne.s32.totalorder %s60, %s63
      %p69 = scmp.eq.s32.totalorder %s24, 0
      %p70 = por %p68, %p69
      %p71 = scmp.ne.s32.totalorder %s60, %s63
      %p72 = scmp.eq.s32.totalorder %s29, 1
      %p73 = por %p71, %p72
      %p74 = scmp.ne.s32.totalorder %s63, %s64
      %p75 = scmp.eq.s32.totalorder %s29, 0
      %p76 = por %p74, %p75
      %p77 = scmp.ne.s32.totalorder %s63, %s64
      %p78 = scmp.eq.s32.totalorder %s30, 1
      %p79 = por %p77, %p78
      %p81 = scmp.ne.s32.totalorder %s64, %s80
      %p82 = scmp.eq.s32.totalorder %s30, 0
      %p83 = por %p81, %p82
      %s84 = ssub.s32 %s24, %s31
      %p85 = scmp.eq.s32.totalorder %s84, 0
      %s87 = sadd.s32 %s86, 1
      %s88 = scalar_select %p85, %s86, %s87
      %p91 = pneg %p85
      %p92 = scmp.eq.s32.totalorder %s24, 1
      %p93 = por %p91, %p92
      %p94 = scmp.ne.s32.totalorder %s86, %s89
      %p95 = scmp.eq.s32.totalorder %s24, 0
      %p96 = por %p94, %p95
      %p97 = scmp.ne.s32.totalorder %s86, %s89
      %p98 = scmp.eq.s32.totalorder %s29, 1
      %p99 = por %p97, %p98
      %p100 = scmp.ne.s32.totalorder %s89, %s90
      %p101 = scmp.eq.s32.totalorder %s29, 0
      %p102 = por %p100, %p101
      %p103 = scmp.ne.s32.totalorder %s89, %s90
      %p104 = scmp.eq.s32.totalorder %s30, 1
      %p105 = por %p103, %p104
      %p107 = scmp.ne.s32.totalorder %s90, %s106
      %p108 = scmp.eq.s32.totalorder %s30, 0
      %p109 = por %p107, %p108
      %s110 = ssub.s32 %s24, %s31
      %p111 = scmp.eq.s32.totalorder %s110, 0
      %s113 = sadd.s32 %s112, 1
      %s114 = scalar_select %p111, %s112, %s113
      %p117 = pneg %p111
      %p118 = scmp.eq.s32.totalorder %s24, 1
      %p119 = por %p117, %p118
      %p120 = scmp.ne.s32.totalorder %s112, %s115
      %p121 = scmp.eq.s32.totalorder %s24, 0
      %p122 = por %p120, %p121
      %p123 = scmp.ne.s32.totalorder %s112, %s115
      %p124 = scmp.eq.s32.totalorder %s29, 1
      %p125 = por %p123, %p124
      %p126 = scmp.ne.s32.totalorder %s115, %s116
      %p127 = scmp.eq.s32.totalorder %s29, 0
      %p128 = por %p126, %p127
      %p129 = scmp.ne.s32.totalorder %s115, %s116
      %p130 = scmp.eq.s32.totalorder %s30, 1
      %p131 = por %p129, %p130
      %p133 = scmp.ne.s32.totalorder %s116, %s132
      %p134 = scmp.eq.s32.totalorder %s30, 0
      %p135 = por %p133, %p134
      %s136 = ssub.s32 %s24, %s31
      %p137 = scmp.eq.s32.totalorder %s136, 0
      %s139 = sadd.s32 %s138, 1
      %s140 = scalar_select %p137, %s138, %s139
      %p143 = pneg %p137
      %p144 = scmp.eq.s32.totalorder %s24, 1
      %p145 = por %p143, %p144
      %p146 = scmp.ne.s32.totalorder %s138, %s141
      %p147 = scmp.eq.s32.totalorder %s24, 0
      %p148 = por %p146, %p147
      %p149 = scmp.ne.s32.totalorder %s138, %s141
      %p150 = scmp.eq.s32.totalorder %s29, 1
      %p151 = por %p149, %p150
      %p152 = scmp.ne.s32.totalorder %s141, %s142
      %p153 = scmp.eq.s32.totalorder %s29, 0
      %p154 = por %p152, %p153
      %p155 = scmp.ne.s32.totalorder %s141, %s142
      %p156 = scmp.eq.s32.totalorder %s30, 1
      %p157 = por %p155, %p156
      %p159 = scmp.ne.s32.totalorder %s142, %s158
      %p160 = scmp.eq.s32.totalorder %s30, 0
      %p161 = por %p159, %p160
      %s162 = ssub.s32 %s24, %s31
      %p163 = scmp.eq.s32.totalorder %s162, 0
      %s165 = sadd.s32 %s164, 1
      %s166 = scalar_select %p163, %s164, %s165
      %p169 = pneg %p163
      %p170 = scmp.eq.s32.totalorder %s24, 1
      %p171 = por %p169, %p170
      %p172 = scmp.ne.s32.totalorder %s164, %s167
      %p173 = scmp.eq.s32.totalorder %s24, 0
      %p174 = por %p172, %p173
      %p175 = scmp.ne.s32.totalorder %s164, %s167
      %p176 = scmp.eq.s32.totalorder %s29, 1
      %p177 = por %p175, %p176
      %p178 = scmp.ne.s32.totalorder %s167, %s168
      %p179 = scmp.eq.s32.totalorder %s29, 0
      %p180 = por %p178, %p179
      %p181 = scmp.ne.s32.totalorder %s167, %s168
      %p182 = scmp.eq.s32.totalorder %s30, 1
      %p183 = por %p181, %p182
      %p185 = scmp.ne.s32.totalorder %s168, %s184
      %p186 = scmp.eq.s32.totalorder %s30, 0
      %p187 = por %p185, %p186
      %p188 = scmp.le.s32.totalorder 1, %s24
      %p189 = scmp.lt.s32.totalorder %s24, 3
      %p190 = pnand %p188, %p189
      %p191 = pneg %p190
      // Predicated region
      $region9: #{tpu_custom_call.1} parent=5 // pred_check
        _
      $region10: #{tpu_custom_call.1} parent=5 // pred_check_branch
        %193 = sbr.rel (%p190) target = $region12
      $region11: #{tpu_custom_call.1} parent=5 // pred_region
        %s194 = ssub.s32 %s24, 1
      $region12: #{tpu_custom_call.1} parent=5 // pred_fallthru
        _
      %p195 = scmp.lt.s32.totalorder %s24, 2
      // Predicated region
      $region13: #{tpu_custom_call.1} parent=5 // pred_check
        %p196 = pneg %p195
      $region14: #{tpu_custom_call.1} parent=5 // pred_check_branch
        %198 = sbr.rel (%p196) target = $region16
      $region15: #{tpu_custom_call.1} parent=5 // pred_region
        // Predicated region
        $region17: #{tpu_custom_call.1} parent=15 // pred_check
          %p199 = pneg %p44
        $region18: #{tpu_custom_call.1} parent=15 // pred_check_branch
          %201 = sbr.rel (%p199) target = $region20
        $region19: #{tpu_custom_call.1} parent=15 // pred_region
          %s202 = sand.u32 %s34, 1
          %s203 = scalar_lea.sflag [#allocation3], %s202
          %s204 = sand.u32 %s34, 1
          %s205 = smul.addr %s204, 768
          %s206 = scalar_lea.vmem [#allocation2], %s205
          %s207 = smul.u32 12, %s24
          %s209 = ssub.s32 12288, 12288
          %210 = vsyncadd %s203, %s209
          %s211 = smul.addr %s207, 8
          %s212 = smul.addr %s211, 128
          %s213 = scalar_lea.hbm %s0, %s212
          %s214 = sshll.u32 %s206, 4
          %s215 = int_to_ptr.vmem [resolvable:$true] %s214
          %220 = dma.hbm_to_vmem [thread:$0]  %s213, 12288, %s215, %s203, 1024, 1024, 64
        $region20: #{tpu_custom_call.1} parent=15 // pred_fallthru
          _
        // Predicated region
        $region21: #{tpu_custom_call.1} parent=15 // pred_check
          %p221 = pneg %p70
        $region22: #{tpu_custom_call.1} parent=15 // pred_check_branch
          %223 = sbr.rel (%p221) target = $region24
        $region23: #{tpu_custom_call.1} parent=15 // pred_region
          %s224 = sand.u32 %s24, 1
          %s225 = scalar_lea.sflag [#allocation6], %s224
          %s226 = sand.u32 %s60, 1
          %s227 = smul.addr %s226, 768
          %s228 = scalar_lea.vmem [#allocation5], %s227
          %s229 = smul.u32 12, %s24
          %s231 = ssub.s32 12288, 12288
          %232 = vsyncadd %s225, %s231
          %s233 = smul.addr %s229, 8
          %s234 = smul.addr %s233, 128
          %s235 = scalar_lea.hbm %s1, %s234
          %s236 = sshll.u32 %s228, 4
          %s237 = int_to_ptr.vmem [resolvable:$true] %s236
          %242 = dma.hbm_to_vmem [thread:$0]  %s235, 12288, %s237, %s225, 1024, 1024, 64
        $region24: #{tpu_custom_call.1} parent=15 // pred_fallthru
          _
        // Predicated region
        $region25: #{tpu_custom_call.1} parent=15 // pred_check
          %p243 = pneg %p96
        $region26: #{tpu_custom_call.1} parent=15 // pred_check_branch
          %245 = sbr.rel (%p243) target = $region28
        $region27: #{tpu_custom_call.1} parent=15 // pred_region
          %s246 = sand.u32 %s24, 1
          %s247 = scalar_lea.sflag [#allocation6], %s246
          %s248 = sand.u32 %s86, 1
          %s249 = smul.addr %s248, 768
          %s250 = scalar_lea.vmem [#allocation7], %s249
          %s251 = smul.u32 12, %s24
          %s253 = ssub.s32 12288, 12288
          %254 = vsyncadd %s247, %s253
          %s255 = smul.addr %s251, 8
          %s256 = smul.addr %s255, 128
          %s257 = scalar_lea.hbm %s2, %s256
          %s258 = sshll.u32 %s250, 4
          %s259 = int_to_ptr.vmem [resolvable:$true] %s258
          %264 = dma.hbm_to_vmem [thread:$0]  %s257, 12288, %s259, %s247, 1024, 1024, 64
        $region28: #{tpu_custom_call.1} parent=15 // pred_fallthru
          _
      $region16: #{tpu_custom_call.1} parent=5 // pred_fallthru
        _
      %p265 = scmp.le.s32.totalorder 1, %s24
      %p266 = scmp.lt.s32.totalorder %s24, 3
      %p267 = pnand %p265, %p266
      %p268 = pneg %p267
      // Predicated region
      $region29: #{tpu_custom_call.1} parent=5 // pred_check
        _
      $region30: #{tpu_custom_call.1} parent=5 // pred_check_branch
        %270 = sbr.rel (%p267) target = $region32
      $region31: #{tpu_custom_call.1} parent=5 // pred_region
        %s271 = ssub.s32 %s24, 1
        %s272 = sand.u32 %s37, 1
        %s273 = scalar_lea.sflag [#allocation3], %s272
        %s274 = sand.u32 %s37, 1
        %s275 = smul.addr %s274, 768
        %s276 = scalar_lea.vmem [#allocation2], %s275
        // Predicated region
        $region33: #{tpu_custom_call.1} parent=31 // pred_check
          %p277 = pneg %p50
        $region34: #{tpu_custom_call.1} parent=31 // pred_check_branch
          %279 = sbr.rel (%p277) target = $region36
        $region35: #{tpu_custom_call.1} parent=31 // pred_region
          %280 = dma.done %s273, 12288
        $region36: #{tpu_custom_call.1} parent=31 // pred_fallthru
          _
        %s281 = sand.u32 %s29, 1
        %s282 = scalar_lea.sflag [#allocation6], %s281
        %s283 = sand.u32 %s63, 1
        %s284 = smul.addr %s283, 768
        %s285 = scalar_lea.vmem [#allocation5], %s284
        // Predicated region
        $region37: #{tpu_custom_call.1} parent=31 // pred_check
          %p286 = pneg %p76
        $region38: #{tpu_custom_call.1} parent=31 // pred_check_branch
          %288 = sbr.rel (%p286) target = $region40
        $region39: #{tpu_custom_call.1} parent=31 // pred_region
          %289 = dma.done %s282, 12288
        $region40: #{tpu_custom_call.1} parent=31 // pred_fallthru
          _
        %s290 = sand.u32 %s29, 1
        %s291 = scalar_lea.sflag [#allocation6], %s290
        %s292 = sand.u32 %s89, 1
        %s293 = smul.addr %s292, 768
        %s294 = scalar_lea.vmem [#allocation7], %s293
        // Predicated region
        $region41: #{tpu_custom_call.1} parent=31 // pred_check
          %p295 = pneg %p102
        $region42: #{tpu_custom_call.1} parent=31 // pred_check_branch
          %297 = sbr.rel (%p295) target = $region44
        $region43: #{tpu_custom_call.1} parent=31 // pred_region
          %298 = dma.done %s291, 12288
        $region44: #{tpu_custom_call.1} parent=31 // pred_fallthru
          _
        %s299 = sand.u32 %s37, 1
        %s300 = scalar_lea.sflag [#allocation3], %s299
        %s301 = sand.u32 %s37, 1
        %s302 = smul.addr %s301, 768
        %s303 = scalar_lea.vmem [#allocation2], %s302
        %p304 = pneg %p50
        %p305 = pneg %p47
        %s306 = sand.u32 %s29, 1
        %s307 = scalar_lea.sflag [#allocation6], %s306
        %s308 = sand.u32 %s63, 1
        %s309 = smul.addr %s308, 768
        %s310 = scalar_lea.vmem [#allocation5], %s309
        %p311 = pneg %p76
        %p312 = pneg %p73
        %s313 = sand.u32 %s29, 1
        %s314 = scalar_lea.sflag [#allocation6], %s313
        %s315 = sand.u32 %s89, 1
        %s316 = smul.addr %s315, 768
        %s317 = scalar_lea.vmem [#allocation7], %s316
        %p318 = pneg %p102
        %p319 = pneg %p99
        %p320 = pneg %p128
        %p321 = pneg %p125
        %s322 = sand.u32 %s115, 1
        %s323 = scalar_lea.sflag [#allocation4], %s322
        %s324 = sand.u32 %s115, 1
        %s325 = smul.addr %s324, 768
        %s326 = scalar_lea.vmem [#allocation8], %s325
        %p327 = pneg %p154
        %p328 = pneg %p151
        %s329 = sand.u32 %s29, 1
        %s330 = scalar_lea.sflag [#allocation10], %s329
        %s331 = sand.u32 %s141, 1
        %s332 = smul.addr %s331, 768
        %s333 = scalar_lea.vmem [#allocation9], %s332
        %p334 = pneg %p180
        %p335 = pneg %p177
        %s336 = sand.u32 %s29, 1
        %s337 = scalar_lea.sflag [#allocation10], %s336
        %s338 = sand.u32 %s167, 1
        %s339 = smul.addr %s338, 768
        %s340 = scalar_lea.vmem [#allocation11], %s339
        %s341 = smul.u32 12, %s29
        %s342 = smul.u32 12, %s29
        %s343 = smul.u32 12, %s29
        %s344 = smul.u32 12, %s29
        %s345 = smul.u32 12, %s29
        %s346 = smul.u32 12, %s29
        %v347 = vld [vmem:[%s276] sm:$0xff]
        %v348 = vld [vmem:[%s276 + $0x8] sm:$0xff]
        %v349 = vld [vmem:[%s276 + $0x10] sm:$0xff]
        %v350 = vld [vmem:[%s276 + $0x18] sm:$0xff]
        %v351 = vld [vmem:[%s276 + $0x20] sm:$0xff]
        %v352 = vld [vmem:[%s276 + $0x28] sm:$0xff]
        %v353 = vld [vmem:[%s276 + $0x30] sm:$0xff]
        %v354 = vld [vmem:[%s276 + $0x38] sm:$0xff]
        %v355 = vld [vmem:[%s276 + $0x40] sm:$0xff]
        %v356 = vld [vmem:[%s276 + $0x48] sm:$0xff]
        %v357 = vld [vmem:[%s276 + $0x50] sm:$0xff]
        %v358 = vld [vmem:[%s276 + $0x58] sm:$0xff]
        %v359 = vld [vmem:[%s276 + $0x60] sm:$0xff]
        %v360 = vld [vmem:[%s276 + $0x68] sm:$0xff]
        %v361 = vld [vmem:[%s276 + $0x70] sm:$0xff]
        %v362 = vld [vmem:[%s276 + $0x78] sm:$0xff]
        %v363 = vld [vmem:[%s276 + $0x80] sm:$0xff]
        %v364 = vld [vmem:[%s276 + $0x88] sm:$0xff]
        %v365 = vld [vmem:[%s276 + $0x90] sm:$0xff]
        %v366 = vld [vmem:[%s276 + $0x98] sm:$0xff]
        %v367 = vld [vmem:[%s276 + $0xa0] sm:$0xff]
        %v368 = vld [vmem:[%s276 + $0xa8] sm:$0xff]
        %v369 = vld [vmem:[%s276 + $0xb0] sm:$0xff]
        %v370 = vld [vmem:[%s276 + $0xb8] sm:$0xff]
        %v371 = vld [vmem:[%s276 + $0xc0] sm:$0xff]
        %v372 = vld [vmem:[%s276 + $0xc8] sm:$0xff]
        %v373 = vld [vmem:[%s276 + $0xd0] sm:$0xff]
        %v374 = vld [vmem:[%s276 + $0xd8] sm:$0xff]
        %v375 = vld [vmem:[%s276 + $0xe0] sm:$0xff]
        %v376 = vld [vmem:[%s276 + $0xe8] sm:$0xff]
        %v377 = vld [vmem:[%s276 + $0xf0] sm:$0xff]
        %v378 = vld [vmem:[%s276 + $0xf8] sm:$0xff]
        %v379 = vld [vmem:[%s276 + $0x100] sm:$0xff]
        %v380 = vld [vmem:[%s276 + $0x108] sm:$0xff]
        %v381 = vld [vmem:[%s276 + $0x110] sm:$0xff]
        %v382 = vld [vmem:[%s276 + $0x118] sm:$0xff]
        %v383 = vld [vmem:[%s276 + $0x120] sm:$0xff]
        %v384 = vld [vmem:[%s276 + $0x128] sm:$0xff]
        %v385 = vld [vmem:[%s276 + $0x130] sm:$0xff]
        %v386 = vld [vmem:[%s276 + $0x138] sm:$0xff]
        %v387 = vld [vmem:[%s276 + $0x140] sm:$0xff]
        %v388 = vld [vmem:[%s276 + $0x148] sm:$0xff]
        %v389 = vld [vmem:[%s276 + $0x150] sm:$0xff]
        %v390 = vld [vmem:[%s276 + $0x158] sm:$0xff]
        %v391 = vld [vmem:[%s276 + $0x160] sm:$0xff]
        %v392 = vld [vmem:[%s276 + $0x168] sm:$0xff]
        %v393 = vld [vmem:[%s276 + $0x170] sm:$0xff]
        %v394 = vld [vmem:[%s276 + $0x178] sm:$0xff]
        %v395 = vld [vmem:[%s276 + $0x180] sm:$0xff]
        %v396 = vld [vmem:[%s276 + $0x188] sm:$0xff]
        %v397 = vld [vmem:[%s276 + $0x190] sm:$0xff]
        %v398 = vld [vmem:[%s276 + $0x198] sm:$0xff]
        %v399 = vld [vmem:[%s276 + $0x1a0] sm:$0xff]
        %v400 = vld [vmem:[%s276 + $0x1a8] sm:$0xff]
        %v401 = vld [vmem:[%s276 + $0x1b0] sm:$0xff]
        %v402 = vld [vmem:[%s276 + $0x1b8] sm:$0xff]
        %v403 = vld [vmem:[%s276 + $0x1c0] sm:$0xff]
        %v404 = vld [vmem:[%s276 + $0x1c8] sm:$0xff]
        %v405 = vld [vmem:[%s276 + $0x1d0] sm:$0xff]
        %v406 = vld [vmem:[%s276 + $0x1d8] sm:$0xff]
        %v407 = vld [vmem:[%s276 + $0x1e0] sm:$0xff]
        %v408 = vld [vmem:[%s276 + $0x1e8] sm:$0xff]
        %v409 = vld [vmem:[%s276 + $0x1f0] sm:$0xff]
        %v410 = vld [vmem:[%s276 + $0x1f8] sm:$0xff]
        %v411 = vld [vmem:[%s276 + $0x200] sm:$0xff]
        %v412 = vld [vmem:[%s276 + $0x208] sm:$0xff]
        %v413 = vld [vmem:[%s276 + $0x210] sm:$0xff]
        %v414 = vld [vmem:[%s276 + $0x218] sm:$0xff]
        %v415 = vld [vmem:[%s276 + $0x220] sm:$0xff]
        %v416 = vld [vmem:[%s276 + $0x228] sm:$0xff]
        %v417 = vld [vmem:[%s276 + $0x230] sm:$0xff]
        %v418 = vld [vmem:[%s276 + $0x238] sm:$0xff]
        %v419 = vld [vmem:[%s276 + $0x240] sm:$0xff]
        %v420 = vld [vmem:[%s276 + $0x248] sm:$0xff]
        %v421 = vld [vmem:[%s276 + $0x250] sm:$0xff]
        %v422 = vld [vmem:[%s276 + $0x258] sm:$0xff]
        %v423 = vld [vmem:[%s276 + $0x260] sm:$0xff]
        %v424 = vld [vmem:[%s276 + $0x268] sm:$0xff]
        %v425 = vld [vmem:[%s276 + $0x270] sm:$0xff]
        %v426 = vld [vmem:[%s276 + $0x278] sm:$0xff]
        %v427 = vld [vmem:[%s276 + $0x280] sm:$0xff]
        %v428 = vld [vmem:[%s276 + $0x288] sm:$0xff]
        %v429 = vld [vmem:[%s276 + $0x290] sm:$0xff]
        %v430 = vld [vmem:[%s276 + $0x298] sm:$0xff]
        %v431 = vld [vmem:[%s276 + $0x2a0] sm:$0xff]
        %v432 = vld [vmem:[%s276 + $0x2a8] sm:$0xff]
        %v433 = vld [vmem:[%s276 + $0x2b0] sm:$0xff]
        %v434 = vld [vmem:[%s276 + $0x2b8] sm:$0xff]
        %v435 = vld [vmem:[%s276 + $0x2c0] sm:$0xff]
        %v436 = vld [vmem:[%s276 + $0x2c8] sm:$0xff]
        %v437 = vld [vmem:[%s276 + $0x2d0] sm:$0xff]
        %v438 = vld [vmem:[%s276 + $0x2d8] sm:$0xff]
        %v439 = vld [vmem:[%s276 + $0x2e0] sm:$0xff]
        %v440 = vld [vmem:[%s276 + $0x2e8] sm:$0xff]
        %v441 = vld [vmem:[%s276 + $0x2f0] sm:$0xff]
        %v442 = vld [vmem:[%s276 + $0x2f8] sm:$0xff]
        %v443 = vround.ne.pseudo %v347
        %v444 = vround.ne.pseudo %v348
        %v445 = vround.ne.pseudo %v349
        %v446 = vround.ne.pseudo %v350
        %v447 = vround.ne.pseudo %v351
        %v448 = vround.ne.pseudo %v352
        %v449 = vround.ne.pseudo %v353
        %v450 = vround.ne.pseudo %v354
        %v451 = vround.ne.pseudo %v355
        %v452 = vround.ne.pseudo %v356
        %v453 = vround.ne.pseudo %v357
        %v454 = vround.ne.pseudo %v358
        %v455 = vround.ne.pseudo %v359
        %v456 = vround.ne.pseudo %v360
        %v457 = vround.ne.pseudo %v361
        %v458 = vround.ne.pseudo %v362
        %v459 = vround.ne.pseudo %v363
        %v460 = vround.ne.pseudo %v364
        %v461 = vround.ne.pseudo %v365
        %v462 = vround.ne.pseudo %v366
        %v463 = vround.ne.pseudo %v367
        %v464 = vround.ne.pseudo %v368
        %v465 = vround.ne.pseudo %v369
        %v466 = vround.ne.pseudo %v370
        %v467 = vround.ne.pseudo %v371
        %v468 = vround.ne.pseudo %v372
        %v469 = vround.ne.pseudo %v373
        %v470 = vround.ne.pseudo %v374
        %v471 = vround.ne.pseudo %v375
        %v472 = vround.ne.pseudo %v376
        %v473 = vround.ne.pseudo %v377
        %v474 = vround.ne.pseudo %v378
        %v475 = vround.ne.pseudo %v379
        %v476 = vround.ne.pseudo %v380
        %v477 = vround.ne.pseudo %v381
        %v478 = vround.ne.pseudo %v382
        %v479 = vround.ne.pseudo %v383
        %v480 = vround.ne.pseudo %v384
        %v481 = vround.ne.pseudo %v385
        %v482 = vround.ne.pseudo %v386
        %v483 = vround.ne.pseudo %v387
        %v484 = vround.ne.pseudo %v388
        %v485 = vround.ne.pseudo %v389
        %v486 = vround.ne.pseudo %v390
        %v487 = vround.ne.pseudo %v391
        %v488 = vround.ne.pseudo %v392
        %v489 = vround.ne.pseudo %v393
        %v490 = vround.ne.pseudo %v394
        %v491 = vround.ne.pseudo %v395
        %v492 = vround.ne.pseudo %v396
        %v493 = vround.ne.pseudo %v397
        %v494 = vround.ne.pseudo %v398
        %v495 = vround.ne.pseudo %v399
        %v496 = vround.ne.pseudo %v400
        %v497 = vround.ne.pseudo %v401
        %v498 = vround.ne.pseudo %v402
        %v499 = vround.ne.pseudo %v403
        %v500 = vround.ne.pseudo %v404
        %v501 = vround.ne.pseudo %v405
        %v502 = vround.ne.pseudo %v406
        %v503 = vround.ne.pseudo %v407
        %v504 = vround.ne.pseudo %v408
        %v505 = vround.ne.pseudo %v409
        %v506 = vround.ne.pseudo %v410
        %v507 = vround.ne.pseudo %v411
        %v508 = vround.ne.pseudo %v412
        %v509 = vround.ne.pseudo %v413
        %v510 = vround.ne.pseudo %v414
        %v511 = vround.ne.pseudo %v415
        %v512 = vround.ne.pseudo %v416
        %v513 = vround.ne.pseudo %v417
        %v514 = vround.ne.pseudo %v418
        %v515 = vround.ne.pseudo %v419
        %v516 = vround.ne.pseudo %v420
        %v517 = vround.ne.pseudo %v421
        %v518 = vround.ne.pseudo %v422
        %v519 = vround.ne.pseudo %v423
        %v520 = vround.ne.pseudo %v424
        %v521 = vround.ne.pseudo %v425
        %v522 = vround.ne.pseudo %v426
        %v523 = vround.ne.pseudo %v427
        %v524 = vround.ne.pseudo %v428
        %v525 = vround.ne.pseudo %v429
        %v526 = vround.ne.pseudo %v430
        %v527 = vround.ne.pseudo %v431
        %v528 = vround.ne.pseudo %v432
        %v529 = vround.ne.pseudo %v433
        %v530 = vround.ne.pseudo %v434
        %v531 = vround.ne.pseudo %v435
        %v532 = vround.ne.pseudo %v436
        %v533 = vround.ne.pseudo %v437
        %v534 = vround.ne.pseudo %v438
        %v535 = vround.ne.pseudo %v439
        %v536 = vround.ne.pseudo %v440
        %v537 = vround.ne.pseudo %v441
        %v538 = vround.ne.pseudo %v442
        %539 = vst [vmem:[%s326] sm:$0xff] %v443
        %540 = vst [vmem:[%s326 + $0x8] sm:$0xff] %v444
        %541 = vst [vmem:[%s326 + $0x10] sm:$0xff] %v445
        %542 = vst [vmem:[%s326 + $0x18] sm:$0xff] %v446
        %543 = vst [vmem:[%s326 + $0x20] sm:$0xff] %v447
        %544 = vst [vmem:[%s326 + $0x28] sm:$0xff] %v448
        %545 = vst [vmem:[%s326 + $0x30] sm:$0xff] %v449
        %546 = vst [vmem:[%s326 + $0x38] sm:$0xff] %v450
        %547 = vst [vmem:[%s326 + $0x40] sm:$0xff] %v451
        %548 = vst [vmem:[%s326 + $0x48] sm:$0xff] %v452
        %549 = vst [vmem:[%s326 + $0x50] sm:$0xff] %v453
        %550 = vst [vmem:[%s326 + $0x58] sm:$0xff] %v454
        %551 = vst [vmem:[%s326 + $0x60] sm:$0xff] %v455
        %552 = vst [vmem:[%s326 + $0x68] sm:$0xff] %v456
        %553 = vst [vmem:[%s326 + $0x70] sm:$0xff] %v457
        %554 = vst [vmem:[%s326 + $0x78] sm:$0xff] %v458
        %555 = vst [vmem:[%s326 + $0x80] sm:$0xff] %v459
        %556 = vst [vmem:[%s326 + $0x88] sm:$0xff] %v460
        %557 = vst [vmem:[%s326 + $0x90] sm:$0xff] %v461
        %558 = vst [vmem:[%s326 + $0x98] sm:$0xff] %v462
        %559 = vst [vmem:[%s326 + $0xa0] sm:$0xff] %v463
        %560 = vst [vmem:[%s326 + $0xa8] sm:$0xff] %v464
        %561 = vst [vmem:[%s326 + $0xb0] sm:$0xff] %v465
        %562 = vst [vmem:[%s326 + $0xb8] sm:$0xff] %v466
        %563 = vst [vmem:[%s326 + $0xc0] sm:$0xff] %v467
        %564 = vst [vmem:[%s326 + $0xc8] sm:$0xff] %v468
        %565 = vst [vmem:[%s326 + $0xd0] sm:$0xff] %v469
        %566 = vst [vmem:[%s326 + $0xd8] sm:$0xff] %v470
        %567 = vst [vmem:[%s326 + $0xe0] sm:$0xff] %v471
        %568 = vst [vmem:[%s326 + $0xe8] sm:$0xff] %v472
        %569 = vst [vmem:[%s326 + $0xf0] sm:$0xff] %v473
        %570 = vst [vmem:[%s326 + $0xf8] sm:$0xff] %v474
        %571 = vst [vmem:[%s326 + $0x100] sm:$0xff] %v475
        %572 = vst [vmem:[%s326 + $0x108] sm:$0xff] %v476
        %573 = vst [vmem:[%s326 + $0x110] sm:$0xff] %v477
        %574 = vst [vmem:[%s326 + $0x118] sm:$0xff] %v478
        %575 = vst [vmem:[%s326 + $0x120] sm:$0xff] %v479
        %576 = vst [vmem:[%s326 + $0x128] sm:$0xff] %v480
        %577 = vst [vmem:[%s326 + $0x130] sm:$0xff] %v481
        %578 = vst [vmem:[%s326 + $0x138] sm:$0xff] %v482
        %579 = vst [vmem:[%s326 + $0x140] sm:$0xff] %v483
        %580 = vst [vmem:[%s326 + $0x148] sm:$0xff] %v484
        %581 = vst [vmem:[%s326 + $0x150] sm:$0xff] %v485
        %582 = vst [vmem:[%s326 + $0x158] sm:$0xff] %v486
        %583 = vst [vmem:[%s326 + $0x160] sm:$0xff] %v487
        %584 = vst [vmem:[%s326 + $0x168] sm:$0xff] %v488
        %585 = vst [vmem:[%s326 + $0x170] sm:$0xff] %v489
        %586 = vst [vmem:[%s326 + $0x178] sm:$0xff] %v490
        %587 = vst [vmem:[%s326 + $0x180] sm:$0xff] %v491
        %588 = vst [vmem:[%s326 + $0x188] sm:$0xff] %v492
        %589 = vst [vmem:[%s326 + $0x190] sm:$0xff] %v493
        %590 = vst [vmem:[%s326 + $0x198] sm:$0xff] %v494
        %591 = vst [vmem:[%s326 + $0x1a0] sm:$0xff] %v495
        %592 = vst [vmem:[%s326 + $0x1a8] sm:$0xff] %v496
        %593 = vst [vmem:[%s326 + $0x1b0] sm:$0xff] %v497
        %594 = vst [vmem:[%s326 + $0x1b8] sm:$0xff] %v498
        %595 = vst [vmem:[%s326 + $0x1c0] sm:$0xff] %v499
        %596 = vst [vmem:[%s326 + $0x1c8] sm:$0xff] %v500
        %597 = vst [vmem:[%s326 + $0x1d0] sm:$0xff] %v501
        %598 = vst [vmem:[%s326 + $0x1d8] sm:$0xff] %v502
        %599 = vst [vmem:[%s326 + $0x1e0] sm:$0xff] %v503
        %600 = vst [vmem:[%s326 + $0x1e8] sm:$0xff] %v504
        %601 = vst [vmem:[%s326 + $0x1f0] sm:$0xff] %v505
        %602 = vst [vmem:[%s326 + $0x1f8] sm:$0xff] %v506
        %603 = vst [vmem:[%s326 + $0x200] sm:$0xff] %v507
        %604 = vst [vmem:[%s326 + $0x208] sm:$0xff] %v508
        %605 = vst [vmem:[%s326 + $0x210] sm:$0xff] %v509
        %606 = vst [vmem:[%s326 + $0x218] sm:$0xff] %v510
        %607 = vst [vmem:[%s326 + $0x220] sm:$0xff] %v511
        %608 = vst [vmem:[%s326 + $0x228] sm:$0xff] %v512
        %609 = vst [vmem:[%s326 + $0x230] sm:$0xff] %v513
        %610 = vst [vmem:[%s326 + $0x238] sm:$0xff] %v514
        %611 = vst [vmem:[%s326 + $0x240] sm:$0xff] %v515
        %612 = vst [vmem:[%s326 + $0x248] sm:$0xff] %v516
        %613 = vst [vmem:[%s326 + $0x250] sm:$0xff] %v517
        %614 = vst [vmem:[%s326 + $0x258] sm:$0xff] %v518
        %615 = vst [vmem:[%s326 + $0x260] sm:$0xff] %v519
        %616 = vst [vmem:[%s326 + $0x268] sm:$0xff] %v520
        %617 = vst [vmem:[%s326 + $0x270] sm:$0xff] %v521
        %618 = vst [vmem:[%s326 + $0x278] sm:$0xff] %v522
        %619 = vst [vmem:[%s326 + $0x280] sm:$0xff] %v523
        %620 = vst [vmem:[%s326 + $0x288] sm:$0xff] %v524
        %621 = vst [vmem:[%s326 + $0x290] sm:$0xff] %v525
        %622 = vst [vmem:[%s326 + $0x298] sm:$0xff] %v526
        %623 = vst [vmem:[%s326 + $0x2a0] sm:$0xff] %v527
        %624 = vst [vmem:[%s326 + $0x2a8] sm:$0xff] %v528
        %625 = vst [vmem:[%s326 + $0x2b0] sm:$0xff] %v529
        %626 = vst [vmem:[%s326 + $0x2b8] sm:$0xff] %v530
        %627 = vst [vmem:[%s326 + $0x2c0] sm:$0xff] %v531
        %628 = vst [vmem:[%s326 + $0x2c8] sm:$0xff] %v532
        %629 = vst [vmem:[%s326 + $0x2d0] sm:$0xff] %v533
        %630 = vst [vmem:[%s326 + $0x2d8] sm:$0xff] %v534
        %631 = vst [vmem:[%s326 + $0x2e0] sm:$0xff] %v535
        %632 = vst [vmem:[%s326 + $0x2e8] sm:$0xff] %v536
        %633 = vst [vmem:[%s326 + $0x2f0] sm:$0xff] %v537
        %634 = vst [vmem:[%s326 + $0x2f8] sm:$0xff] %v538
        %v635 = vld [vmem:[%s285] sm:$0xff]
        %v636 = vld [vmem:[%s285 + $0x8] sm:$0xff]
        %v637 = vld [vmem:[%s285 + $0x10] sm:$0xff]
        %v638 = vld [vmem:[%s285 + $0x18] sm:$0xff]
        %v639 = vld [vmem:[%s285 + $0x20] sm:$0xff]
        %v640 = vld [vmem:[%s285 + $0x28] sm:$0xff]
        %v641 = vld [vmem:[%s285 + $0x30] sm:$0xff]
        %v642 = vld [vmem:[%s285 + $0x38] sm:$0xff]
        %v643 = vld [vmem:[%s285 + $0x40] sm:$0xff]
        %v644 = vld [vmem:[%s285 + $0x48] sm:$0xff]
        %v645 = vld [vmem:[%s285 + $0x50] sm:$0xff]
        %v646 = vld [vmem:[%s285 + $0x58] sm:$0xff]
        %v647 = vld [vmem:[%s285 + $0x60] sm:$0xff]
        %v648 = vld [vmem:[%s285 + $0x68] sm:$0xff]
        %v649 = vld [vmem:[%s285 + $0x70] sm:$0xff]
        %v650 = vld [vmem:[%s285 + $0x78] sm:$0xff]
        %v651 = vld [vmem:[%s285 + $0x80] sm:$0xff]
        %v652 = vld [vmem:[%s285 + $0x88] sm:$0xff]
        %v653 = vld [vmem:[%s285 + $0x90] sm:$0xff]
        %v654 = vld [vmem:[%s285 + $0x98] sm:$0xff]
        %v655 = vld [vmem:[%s285 + $0xa0] sm:$0xff]
        %v656 = vld [vmem:[%s285 + $0xa8] sm:$0xff]
        %v657 = vld [vmem:[%s285 + $0xb0] sm:$0xff]
        %v658 = vld [vmem:[%s285 + $0xb8] sm:$0xff]
        %v659 = vld [vmem:[%s285 + $0xc0] sm:$0xff]
        %v660 = vld [vmem:[%s285 + $0xc8] sm:$0xff]
        %v661 = vld [vmem:[%s285 + $0xd0] sm:$0xff]
        %v662 = vld [vmem:[%s285 + $0xd8] sm:$0xff]
        %v663 = vld [vmem:[%s285 + $0xe0] sm:$0xff]
        %v664 = vld [vmem:[%s285 + $0xe8] sm:$0xff]
        %v665 = vld [vmem:[%s285 + $0xf0] sm:$0xff]
        %v666 = vld [vmem:[%s285 + $0xf8] sm:$0xff]
        %v667 = vld [vmem:[%s285 + $0x100] sm:$0xff]
        %v668 = vld [vmem:[%s285 + $0x108] sm:$0xff]
        %v669 = vld [vmem:[%s285 + $0x110] sm:$0xff]
        %v670 = vld [vmem:[%s285 + $0x118] sm:$0xff]
        %v671 = vld [vmem:[%s285 + $0x120] sm:$0xff]
        %v672 = vld [vmem:[%s285 + $0x128] sm:$0xff]
        %v673 = vld [vmem:[%s285 + $0x130] sm:$0xff]
        %v674 = vld [vmem:[%s285 + $0x138] sm:$0xff]
        %v675 = vld [vmem:[%s285 + $0x140] sm:$0xff]
        %v676 = vld [vmem:[%s285 + $0x148] sm:$0xff]
        %v677 = vld [vmem:[%s285 + $0x150] sm:$0xff]
        %v678 = vld [vmem:[%s285 + $0x158] sm:$0xff]
        %v679 = vld [vmem:[%s285 + $0x160] sm:$0xff]
        %v680 = vld [vmem:[%s285 + $0x168] sm:$0xff]
        %v681 = vld [vmem:[%s285 + $0x170] sm:$0xff]
        %v682 = vld [vmem:[%s285 + $0x178] sm:$0xff]
        %v683 = vld [vmem:[%s285 + $0x180] sm:$0xff]
        %v684 = vld [vmem:[%s285 + $0x188] sm:$0xff]
        %v685 = vld [vmem:[%s285 + $0x190] sm:$0xff]
        %v686 = vld [vmem:[%s285 + $0x198] sm:$0xff]
        %v687 = vld [vmem:[%s285 + $0x1a0] sm:$0xff]
        %v688 = vld [vmem:[%s285 + $0x1a8] sm:$0xff]
        %v689 = vld [vmem:[%s285 + $0x1b0] sm:$0xff]
        %v690 = vld [vmem:[%s285 + $0x1b8] sm:$0xff]
        %v691 = vld [vmem:[%s285 + $0x1c0] sm:$0xff]
        %v692 = vld [vmem:[%s285 + $0x1c8] sm:$0xff]
        %v693 = vld [vmem:[%s285 + $0x1d0] sm:$0xff]
        %v694 = vld [vmem:[%s285 + $0x1d8] sm:$0xff]
        %v695 = vld [vmem:[%s285 + $0x1e0] sm:$0xff]
        %v696 = vld [vmem:[%s285 + $0x1e8] sm:$0xff]
        %v697 = vld [vmem:[%s285 + $0x1f0] sm:$0xff]
        %v698 = vld [vmem:[%s285 + $0x1f8] sm:$0xff]
        %v699 = vld [vmem:[%s285 + $0x200] sm:$0xff]
        %v700 = vld [vmem:[%s285 + $0x208] sm:$0xff]
        %v701 = vld [vmem:[%s285 + $0x210] sm:$0xff]
        %v702 = vld [vmem:[%s285 + $0x218] sm:$0xff]
        %v703 = vld [vmem:[%s285 + $0x220] sm:$0xff]
        %v704 = vld [vmem:[%s285 + $0x228] sm:$0xff]
        %v705 = vld [vmem:[%s285 + $0x230] sm:$0xff]
        %v706 = vld [vmem:[%s285 + $0x238] sm:$0xff]
        %v707 = vld [vmem:[%s285 + $0x240] sm:$0xff]
        %v708 = vld [vmem:[%s285 + $0x248] sm:$0xff]
        %v709 = vld [vmem:[%s285 + $0x250] sm:$0xff]
        %v710 = vld [vmem:[%s285 + $0x258] sm:$0xff]
        %v711 = vld [vmem:[%s285 + $0x260] sm:$0xff]
        %v712 = vld [vmem:[%s285 + $0x268] sm:$0xff]
        %v713 = vld [vmem:[%s285 + $0x270] sm:$0xff]
        %v714 = vld [vmem:[%s285 + $0x278] sm:$0xff]
        %v715 = vld [vmem:[%s285 + $0x280] sm:$0xff]
        %v716 = vld [vmem:[%s285 + $0x288] sm:$0xff]
        %v717 = vld [vmem:[%s285 + $0x290] sm:$0xff]
        %v718 = vld [vmem:[%s285 + $0x298] sm:$0xff]
        %v719 = vld [vmem:[%s285 + $0x2a0] sm:$0xff]
        %v720 = vld [vmem:[%s285 + $0x2a8] sm:$0xff]
        %v721 = vld [vmem:[%s285 + $0x2b0] sm:$0xff]
        %v722 = vld [vmem:[%s285 + $0x2b8] sm:$0xff]
        %v723 = vld [vmem:[%s285 + $0x2c0] sm:$0xff]
        %v724 = vld [vmem:[%s285 + $0x2c8] sm:$0xff]
        %v725 = vld [vmem:[%s285 + $0x2d0] sm:$0xff]
        %v726 = vld [vmem:[%s285 + $0x2d8] sm:$0xff]
        %v727 = vld [vmem:[%s285 + $0x2e0] sm:$0xff]
        %v728 = vld [vmem:[%s285 + $0x2e8] sm:$0xff]
        %v729 = vld [vmem:[%s285 + $0x2f0] sm:$0xff]
        %v730 = vld [vmem:[%s285 + $0x2f8] sm:$0xff]
        %v731 = vfloor.f32 %v635
        %v732 = vfloor.f32 %v636
        %v733 = vfloor.f32 %v637
        %v734 = vfloor.f32 %v638
        %v735 = vfloor.f32 %v639
        %v736 = vfloor.f32 %v640
        %v737 = vfloor.f32 %v641
        %v738 = vfloor.f32 %v642
        %v739 = vfloor.f32 %v643
        %v740 = vfloor.f32 %v644
        %v741 = vfloor.f32 %v645
        %v742 = vfloor.f32 %v646
        %v743 = vfloor.f32 %v647
        %v744 = vfloor.f32 %v648
        %v745 = vfloor.f32 %v649
        %v746 = vfloor.f32 %v650
        %v747 = vfloor.f32 %v651
        %v748 = vfloor.f32 %v652
        %v749 = vfloor.f32 %v653
        %v750 = vfloor.f32 %v654
        %v751 = vfloor.f32 %v655
        %v752 = vfloor.f32 %v656
        %v753 = vfloor.f32 %v657
        %v754 = vfloor.f32 %v658
        %v755 = vfloor.f32 %v659
        %v756 = vfloor.f32 %v660
        %v757 = vfloor.f32 %v661
        %v758 = vfloor.f32 %v662
        %v759 = vfloor.f32 %v663
        %v760 = vfloor.f32 %v664
        %v761 = vfloor.f32 %v665
        %v762 = vfloor.f32 %v666
        %v763 = vfloor.f32 %v667
        %v764 = vfloor.f32 %v668
        %v765 = vfloor.f32 %v669
        %v766 = vfloor.f32 %v670
        %v767 = vfloor.f32 %v671
        %v768 = vfloor.f32 %v672
        %v769 = vfloor.f32 %v673
        %v770 = vfloor.f32 %v674
        %v771 = vfloor.f32 %v675
        %v772 = vfloor.f32 %v676
        %v773 = vfloor.f32 %v677
        %v774 = vfloor.f32 %v678
        %v775 = vfloor.f32 %v679
        %v776 = vfloor.f32 %v680
        %v777 = vfloor.f32 %v681
        %v778 = vfloor.f32 %v682
        %v779 = vfloor.f32 %v683
        %v780 = vfloor.f32 %v684
        %v781 = vfloor.f32 %v685
        %v782 = vfloor.f32 %v686
        %v783 = vfloor.f32 %v687
        %v784 = vfloor.f32 %v688
        %v785 = vfloor.f32 %v689
        %v786 = vfloor.f32 %v690
        %v787 = vfloor.f32 %v691
        %v788 = vfloor.f32 %v692
        %v789 = vfloor.f32 %v693
        %v790 = vfloor.f32 %v694
        %v791 = vfloor.f32 %v695
        %v792 = vfloor.f32 %v696
        %v793 = vfloor.f32 %v697
        %v794 = vfloor.f32 %v698
        %v795 = vfloor.f32 %v699
        %v796 = vfloor.f32 %v700
        %v797 = vfloor.f32 %v701
        %v798 = vfloor.f32 %v702
        %v799 = vfloor.f32 %v703
        %v800 = vfloor.f32 %v704
        %v801 = vfloor.f32 %v705
        %v802 = vfloor.f32 %v706
        %v803 = vfloor.f32 %v707
        %v804 = vfloor.f32 %v708
        %v805 = vfloor.f32 %v709
        %v806 = vfloor.f32 %v710
        %v807 = vfloor.f32 %v711
        %v808 = vfloor.f32 %v712
        %v809 = vfloor.f32 %v713
        %v810 = vfloor.f32 %v714
        %v811 = vfloor.f32 %v715
        %v812 = vfloor.f32 %v716
        %v813 = vfloor.f32 %v717
        %v814 = vfloor.f32 %v718
        %v815 = vfloor.f32 %v719
        %v816 = vfloor.f32 %v720
        %v817 = vfloor.f32 %v721
        %v818 = vfloor.f32 %v722
        %v819 = vfloor.f32 %v723
        %v820 = vfloor.f32 %v724
        %v821 = vfloor.f32 %v725
        %v822 = vfloor.f32 %v726
        %v823 = vfloor.f32 %v727
        %v824 = vfloor.f32 %v728
        %v825 = vfloor.f32 %v729
        %v826 = vfloor.f32 %v730
        %827 = vst [vmem:[%s333] sm:$0xff] %v731
        %828 = vst [vmem:[%s333 + $0x8] sm:$0xff] %v732
        %829 = vst [vmem:[%s333 + $0x10] sm:$0xff] %v733
        %830 = vst [vmem:[%s333 + $0x18] sm:$0xff] %v734
        %831 = vst [vmem:[%s333 + $0x20] sm:$0xff] %v735
        %832 = vst [vmem:[%s333 + $0x28] sm:$0xff] %v736
        %833 = vst [vmem:[%s333 + $0x30] sm:$0xff] %v737
        %834 = vst [vmem:[%s333 + $0x38] sm:$0xff] %v738
        %835 = vst [vmem:[%s333 + $0x40] sm:$0xff] %v739
        %836 = vst [vmem:[%s333 + $0x48] sm:$0xff] %v740
        %837 = vst [vmem:[%s333 + $0x50] sm:$0xff] %v741
        %838 = vst [vmem:[%s333 + $0x58] sm:$0xff] %v742
        %839 = vst [vmem:[%s333 + $0x60] sm:$0xff] %v743
        %840 = vst [vmem:[%s333 + $0x68] sm:$0xff] %v744
        %841 = vst [vmem:[%s333 + $0x70] sm:$0xff] %v745
        %842 = vst [vmem:[%s333 + $0x78] sm:$0xff] %v746
        %843 = vst [vmem:[%s333 + $0x80] sm:$0xff] %v747
        %844 = vst [vmem:[%s333 + $0x88] sm:$0xff] %v748
        %845 = vst [vmem:[%s333 + $0x90] sm:$0xff] %v749
        %846 = vst [vmem:[%s333 + $0x98] sm:$0xff] %v750
        %847 = vst [vmem:[%s333 + $0xa0] sm:$0xff] %v751
        %848 = vst [vmem:[%s333 + $0xa8] sm:$0xff] %v752
        %849 = vst [vmem:[%s333 + $0xb0] sm:$0xff] %v753
        %850 = vst [vmem:[%s333 + $0xb8] sm:$0xff] %v754
        %851 = vst [vmem:[%s333 + $0xc0] sm:$0xff] %v755
        %852 = vst [vmem:[%s333 + $0xc8] sm:$0xff] %v756
        %853 = vst [vmem:[%s333 + $0xd0] sm:$0xff] %v757
        %854 = vst [vmem:[%s333 + $0xd8] sm:$0xff] %v758
        %855 = vst [vmem:[%s333 + $0xe0] sm:$0xff] %v759
        %856 = vst [vmem:[%s333 + $0xe8] sm:$0xff] %v760
        %857 = vst [vmem:[%s333 + $0xf0] sm:$0xff] %v761
        %858 = vst [vmem:[%s333 + $0xf8] sm:$0xff] %v762
        %859 = vst [vmem:[%s333 + $0x100] sm:$0xff] %v763
        %860 = vst [vmem:[%s333 + $0x108] sm:$0xff] %v764
        %861 = vst [vmem:[%s333 + $0x110] sm:$0xff] %v765
        %862 = vst [vmem:[%s333 + $0x118] sm:$0xff] %v766
        %863 = vst [vmem:[%s333 + $0x120] sm:$0xff] %v767
        %864 = vst [vmem:[%s333 + $0x128] sm:$0xff] %v768
        %865 = vst [vmem:[%s333 + $0x130] sm:$0xff] %v769
        %866 = vst [vmem:[%s333 + $0x138] sm:$0xff] %v770
        %867 = vst [vmem:[%s333 + $0x140] sm:$0xff] %v771
        %868 = vst [vmem:[%s333 + $0x148] sm:$0xff] %v772
        %869 = vst [vmem:[%s333 + $0x150] sm:$0xff] %v773
        %870 = vst [vmem:[%s333 + $0x158] sm:$0xff] %v774
        %871 = vst [vmem:[%s333 + $0x160] sm:$0xff] %v775
        %872 = vst [vmem:[%s333 + $0x168] sm:$0xff] %v776
        %873 = vst [vmem:[%s333 + $0x170] sm:$0xff] %v777
        %874 = vst [vmem:[%s333 + $0x178] sm:$0xff] %v778
        %875 = vst [vmem:[%s333 + $0x180] sm:$0xff] %v779
        %876 = vst [vmem:[%s333 + $0x188] sm:$0xff] %v780
        %877 = vst [vmem:[%s333 + $0x190] sm:$0xff] %v781
        %878 = vst [vmem:[%s333 + $0x198] sm:$0xff] %v782
        %879 = vst [vmem:[%s333 + $0x1a0] sm:$0xff] %v783
        %880 = vst [vmem:[%s333 + $0x1a8] sm:$0xff] %v784
        %881 = vst [vmem:[%s333 + $0x1b0] sm:$0xff] %v785
        %882 = vst [vmem:[%s333 + $0x1b8] sm:$0xff] %v786
        %883 = vst [vmem:[%s333 + $0x1c0] sm:$0xff] %v787
        %884 = vst [vmem:[%s333 + $0x1c8] sm:$0xff] %v788
        %885 = vst [vmem:[%s333 + $0x1d0] sm:$0xff] %v789
        %886 = vst [vmem:[%s333 + $0x1d8] sm:$0xff] %v790
        %887 = vst [vmem:[%s333 + $0x1e0] sm:$0xff] %v791
        %888 = vst [vmem:[%s333 + $0x1e8] sm:$0xff] %v792
        %889 = vst [vmem:[%s333 + $0x1f0] sm:$0xff] %v793
        %890 = vst [vmem:[%s333 + $0x1f8] sm:$0xff] %v794
        %891 = vst [vmem:[%s333 + $0x200] sm:$0xff] %v795
        %892 = vst [vmem:[%s333 + $0x208] sm:$0xff] %v796
        %893 = vst [vmem:[%s333 + $0x210] sm:$0xff] %v797
        %894 = vst [vmem:[%s333 + $0x218] sm:$0xff] %v798
        %895 = vst [vmem:[%s333 + $0x220] sm:$0xff] %v799
        %896 = vst [vmem:[%s333 + $0x228] sm:$0xff] %v800
        %897 = vst [vmem:[%s333 + $0x230] sm:$0xff] %v801
        %898 = vst [vmem:[%s333 + $0x238] sm:$0xff] %v802
        %899 = vst [vmem:[%s333 + $0x240] sm:$0xff] %v803
        %900 = vst [vmem:[%s333 + $0x248] sm:$0xff] %v804
        %901 = vst [vmem:[%s333 + $0x250] sm:$0xff] %v805
        %902 = vst [vmem:[%s333 + $0x258] sm:$0xff] %v806
        %903 = vst [vmem:[%s333 + $0x260] sm:$0xff] %v807
        %904 = vst [vmem:[%s333 + $0x268] sm:$0xff] %v808
        %905 = vst [vmem:[%s333 + $0x270] sm:$0xff] %v809
        %906 = vst [vmem:[%s333 + $0x278] sm:$0xff] %v810
        %907 = vst [vmem:[%s333 + $0x280] sm:$0xff] %v811
        %908 = vst [vmem:[%s333 + $0x288] sm:$0xff] %v812
        %909 = vst [vmem:[%s333 + $0x290] sm:$0xff] %v813
        %910 = vst [vmem:[%s333 + $0x298] sm:$0xff] %v814
        %911 = vst [vmem:[%s333 + $0x2a0] sm:$0xff] %v815
        %912 = vst [vmem:[%s333 + $0x2a8] sm:$0xff] %v816
        %913 = vst [vmem:[%s333 + $0x2b0] sm:$0xff] %v817
        %914 = vst [vmem:[%s333 + $0x2b8] sm:$0xff] %v818
        %915 = vst [vmem:[%s333 + $0x2c0] sm:$0xff] %v819
        %916 = vst [vmem:[%s333 + $0x2c8] sm:$0xff] %v820
        %917 = vst [vmem:[%s333 + $0x2d0] sm:$0xff] %v821
        %918 = vst [vmem:[%s333 + $0x2d8] sm:$0xff] %v822
        %919 = vst [vmem:[%s333 + $0x2e0] sm:$0xff] %v823
        %920 = vst [vmem:[%s333 + $0x2e8] sm:$0xff] %v824
        %921 = vst [vmem:[%s333 + $0x2f0] sm:$0xff] %v825
        %922 = vst [vmem:[%s333 + $0x2f8] sm:$0xff] %v826
        %v923 = vld [vmem:[%s294] sm:$0xff]
        %v924 = vld [vmem:[%s294 + $0x8] sm:$0xff]
        %v925 = vld [vmem:[%s294 + $0x10] sm:$0xff]
        %v926 = vld [vmem:[%s294 + $0x18] sm:$0xff]
        %v927 = vld [vmem:[%s294 + $0x20] sm:$0xff]
        %v928 = vld [vmem:[%s294 + $0x28] sm:$0xff]
        %v929 = vld [vmem:[%s294 + $0x30] sm:$0xff]
        %v930 = vld [vmem:[%s294 + $0x38] sm:$0xff]
        %v931 = vld [vmem:[%s294 + $0x40] sm:$0xff]
        %v932 = vld [vmem:[%s294 + $0x48] sm:$0xff]
        %v933 = vld [vmem:[%s294 + $0x50] sm:$0xff]
        %v934 = vld [vmem:[%s294 + $0x58] sm:$0xff]
        %v935 = vld [vmem:[%s294 + $0x60] sm:$0xff]
        %v936 = vld [vmem:[%s294 + $0x68] sm:$0xff]
        %v937 = vld [vmem:[%s294 + $0x70] sm:$0xff]
        %v938 = vld [vmem:[%s294 + $0x78] sm:$0xff]
        %v939 = vld [vmem:[%s294 + $0x80] sm:$0xff]
        %v940 = vld [vmem:[%s294 + $0x88] sm:$0xff]
        %v941 = vld [vmem:[%s294 + $0x90] sm:$0xff]
        %v942 = vld [vmem:[%s294 + $0x98] sm:$0xff]
        %v943 = vld [vmem:[%s294 + $0xa0] sm:$0xff]
        %v944 = vld [vmem:[%s294 + $0xa8] sm:$0xff]
        %v945 = vld [vmem:[%s294 + $0xb0] sm:$0xff]
        %v946 = vld [vmem:[%s294 + $0xb8] sm:$0xff]
        %v947 = vld [vmem:[%s294 + $0xc0] sm:$0xff]
        %v948 = vld [vmem:[%s294 + $0xc8] sm:$0xff]
        %v949 = vld [vmem:[%s294 + $0xd0] sm:$0xff]
        %v950 = vld [vmem:[%s294 + $0xd8] sm:$0xff]
        %v951 = vld [vmem:[%s294 + $0xe0] sm:$0xff]
        %v952 = vld [vmem:[%s294 + $0xe8] sm:$0xff]
        %v953 = vld [vmem:[%s294 + $0xf0] sm:$0xff]
        %v954 = vld [vmem:[%s294 + $0xf8] sm:$0xff]
        %v955 = vld [vmem:[%s294 + $0x100] sm:$0xff]
        %v956 = vld [vmem:[%s294 + $0x108] sm:$0xff]
        %v957 = vld [vmem:[%s294 + $0x110] sm:$0xff]
        %v958 = vld [vmem:[%s294 + $0x118] sm:$0xff]
        %v959 = vld [vmem:[%s294 + $0x120] sm:$0xff]
        %v960 = vld [vmem:[%s294 + $0x128] sm:$0xff]
        %v961 = vld [vmem:[%s294 + $0x130] sm:$0xff]
        %v962 = vld [vmem:[%s294 + $0x138] sm:$0xff]
        %v963 = vld [vmem:[%s294 + $0x140] sm:$0xff]
        %v964 = vld [vmem:[%s294 + $0x148] sm:$0xff]
        %v965 = vld [vmem:[%s294 + $0x150] sm:$0xff]
        %v966 = vld [vmem:[%s294 + $0x158] sm:$0xff]
        %v967 = vld [vmem:[%s294 + $0x160] sm:$0xff]
        %v968 = vld [vmem:[%s294 + $0x168] sm:$0xff]
        %v969 = vld [vmem:[%s294 + $0x170] sm:$0xff]
        %v970 = vld [vmem:[%s294 + $0x178] sm:$0xff]
        %v971 = vld [vmem:[%s294 + $0x180] sm:$0xff]
        %v972 = vld [vmem:[%s294 + $0x188] sm:$0xff]
        %v973 = vld [vmem:[%s294 + $0x190] sm:$0xff]
        %v974 = vld [vmem:[%s294 + $0x198] sm:$0xff]
        %v975 = vld [vmem:[%s294 + $0x1a0] sm:$0xff]
        %v976 = vld [vmem:[%s294 + $0x1a8] sm:$0xff]
        %v977 = vld [vmem:[%s294 + $0x1b0] sm:$0xff]
        %v978 = vld [vmem:[%s294 + $0x1b8] sm:$0xff]
        %v979 = vld [vmem:[%s294 + $0x1c0] sm:$0xff]
        %v980 = vld [vmem:[%s294 + $0x1c8] sm:$0xff]
        %v981 = vld [vmem:[%s294 + $0x1d0] sm:$0xff]
        %v982 = vld [vmem:[%s294 + $0x1d8] sm:$0xff]
        %v983 = vld [vmem:[%s294 + $0x1e0] sm:$0xff]
        %v984 = vld [vmem:[%s294 + $0x1e8] sm:$0xff]
        %v985 = vld [vmem:[%s294 + $0x1f0] sm:$0xff]
        %v986 = vld [vmem:[%s294 + $0x1f8] sm:$0xff]
        %v987 = vld [vmem:[%s294 + $0x200] sm:$0xff]
        %v988 = vld [vmem:[%s294 + $0x208] sm:$0xff]
        %v989 = vld [vmem:[%s294 + $0x210] sm:$0xff]
        %v990 = vld [vmem:[%s294 + $0x218] sm:$0xff]
        %v991 = vld [vmem:[%s294 + $0x220] sm:$0xff]
        %v992 = vld [vmem:[%s294 + $0x228] sm:$0xff]
        %v993 = vld [vmem:[%s294 + $0x230] sm:$0xff]
        %v994 = vld [vmem:[%s294 + $0x238] sm:$0xff]
        %v995 = vld [vmem:[%s294 + $0x240] sm:$0xff]
        %v996 = vld [vmem:[%s294 + $0x248] sm:$0xff]
        %v997 = vld [vmem:[%s294 + $0x250] sm:$0xff]
        %v998 = vld [vmem:[%s294 + $0x258] sm:$0xff]
        %v999 = vld [vmem:[%s294 + $0x260] sm:$0xff]
        %v1000 = vld [vmem:[%s294 + $0x268] sm:$0xff]
        %v1001 = vld [vmem:[%s294 + $0x270] sm:$0xff]
        %v1002 = vld [vmem:[%s294 + $0x278] sm:$0xff]
        %v1003 = vld [vmem:[%s294 + $0x280] sm:$0xff]
        %v1004 = vld [vmem:[%s294 + $0x288] sm:$0xff]
        %v1005 = vld [vmem:[%s294 + $0x290] sm:$0xff]
        %v1006 = vld [vmem:[%s294 + $0x298] sm:$0xff]
        %v1007 = vld [vmem:[%s294 + $0x2a0] sm:$0xff]
        %v1008 = vld [vmem:[%s294 + $0x2a8] sm:$0xff]
        %v1009 = vld [vmem:[%s294 + $0x2b0] sm:$0xff]
        %v1010 = vld [vmem:[%s294 + $0x2b8] sm:$0xff]
        %v1011 = vld [vmem:[%s294 + $0x2c0] sm:$0xff]
        %v1012 = vld [vmem:[%s294 + $0x2c8] sm:$0xff]
        %v1013 = vld [vmem:[%s294 + $0x2d0] sm:$0xff]
        %v1014 = vld [vmem:[%s294 + $0x2d8] sm:$0xff]
        %v1015 = vld [vmem:[%s294 + $0x2e0] sm:$0xff]
        %v1016 = vld [vmem:[%s294 + $0x2e8] sm:$0xff]
        %v1017 = vld [vmem:[%s294 + $0x2f0] sm:$0xff]
        %v1018 = vld [vmem:[%s294 + $0x2f8] sm:$0xff]
        %v1019 = vceil.f32 %v923
        %v1020 = vceil.f32 %v924
        %v1021 = vceil.f32 %v925
        %v1022 = vceil.f32 %v926
        %v1023 = vceil.f32 %v927
        %v1024 = vceil.f32 %v928
        %v1025 = vceil.f32 %v929
        %v1026 = vceil.f32 %v930
        %v1027 = vceil.f32 %v931
        %v1028 = vceil.f32 %v932
        %v1029 = vceil.f32 %v933
        %v1030 = vceil.f32 %v934
        %v1031 = vceil.f32 %v935
        %v1032 = vceil.f32 %v936
        %v1033 = vceil.f32 %v937
        %v1034 = vceil.f32 %v938
        %v1035 = vceil.f32 %v939
        %v1036 = vceil.f32 %v940
        %v1037 = vceil.f32 %v941
        %v1038 = vceil.f32 %v942
        %v1039 = vceil.f32 %v943
        %v1040 = vceil.f32 %v944
        %v1041 = vceil.f32 %v945
        %v1042 = vceil.f32 %v946
        %v1043 = vceil.f32 %v947
        %v1044 = vceil.f32 %v948
        %v1045 = vceil.f32 %v949
        %v1046 = vceil.f32 %v950
        %v1047 = vceil.f32 %v951
        %v1048 = vceil.f32 %v952
        %v1049 = vceil.f32 %v953
        %v1050 = vceil.f32 %v954
        %v1051 = vceil.f32 %v955
        %v1052 = vceil.f32 %v956
        %v1053 = vceil.f32 %v957
        %v1054 = vceil.f32 %v958
        %v1055 = vceil.f32 %v959
        %v1056 = vceil.f32 %v960
        %v1057 = vceil.f32 %v961
        %v1058 = vceil.f32 %v962
        %v1059 = vceil.f32 %v963
        %v1060 = vceil.f32 %v964
        %v1061 = vceil.f32 %v965
        %v1062 = vceil.f32 %v966
        %v1063 = vceil.f32 %v967
        %v1064 = vceil.f32 %v968
        %v1065 = vceil.f32 %v969
        %v1066 = vceil.f32 %v970
        %v1067 = vceil.f32 %v971
        %v1068 = vceil.f32 %v972
        %v1069 = vceil.f32 %v973
        %v1070 = vceil.f32 %v974
        %v1071 = vceil.f32 %v975
        %v1072 = vceil.f32 %v976
        %v1073 = vceil.f32 %v977
        %v1074 = vceil.f32 %v978
        %v1075 = vceil.f32 %v979
        %v1076 = vceil.f32 %v980
        %v1077 = vceil.f32 %v981
        %v1078 = vceil.f32 %v982
        %v1079 = vceil.f32 %v983
        %v1080 = vceil.f32 %v984
        %v1081 = vceil.f32 %v985
        %v1082 = vceil.f32 %v986
        %v1083 = vceil.f32 %v987
        %v1084 = vceil.f32 %v988
        %v1085 = vceil.f32 %v989
        %v1086 = vceil.f32 %v990
        %v1087 = vceil.f32 %v991
        %v1088 = vceil.f32 %v992
        %v1089 = vceil.f32 %v993
        %v1090 = vceil.f32 %v994
        %v1091 = vceil.f32 %v995
        %v1092 = vceil.f32 %v996
        %v1093 = vceil.f32 %v997
        %v1094 = vceil.f32 %v998
        %v1095 = vceil.f32 %v999
        %v1096 = vceil.f32 %v1000
        %v1097 = vceil.f32 %v1001
        %v1098 = vceil.f32 %v1002
        %v1099 = vceil.f32 %v1003
        %v1100 = vceil.f32 %v1004
        %v1101 = vceil.f32 %v1005
        %v1102 = vceil.f32 %v1006
        %v1103 = vceil.f32 %v1007
        %v1104 = vceil.f32 %v1008
        %v1105 = vceil.f32 %v1009
        %v1106 = vceil.f32 %v1010
        %v1107 = vceil.f32 %v1011
        %v1108 = vceil.f32 %v1012
        %v1109 = vceil.f32 %v1013
        %v1110 = vceil.f32 %v1014
        %v1111 = vceil.f32 %v1015
        %v1112 = vceil.f32 %v1016
        %v1113 = vceil.f32 %v1017
        %v1114 = vceil.f32 %v1018
        %1115 = vst [vmem:[%s340] sm:$0xff] %v1019
        %1116 = vst [vmem:[%s340 + $0x8] sm:$0xff] %v1020
        %1117 = vst [vmem:[%s340 + $0x10] sm:$0xff] %v1021
        %1118 = vst [vmem:[%s340 + $0x18] sm:$0xff] %v1022
        %1119 = vst [vmem:[%s340 + $0x20] sm:$0xff] %v1023
        %1120 = vst [vmem:[%s340 + $0x28] sm:$0xff] %v1024
        %1121 = vst [vmem:[%s340 + $0x30] sm:$0xff] %v1025
        %1122 = vst [vmem:[%s340 + $0x38] sm:$0xff] %v1026
        %1123 = vst [vmem:[%s340 + $0x40] sm:$0xff] %v1027
        %1124 = vst [vmem:[%s340 + $0x48] sm:$0xff] %v1028
        %1125 = vst [vmem:[%s340 + $0x50] sm:$0xff] %v1029
        %1126 = vst [vmem:[%s340 + $0x58] sm:$0xff] %v1030
        %1127 = vst [vmem:[%s340 + $0x60] sm:$0xff] %v1031
        %1128 = vst [vmem:[%s340 + $0x68] sm:$0xff] %v1032
        %1129 = vst [vmem:[%s340 + $0x70] sm:$0xff] %v1033
        %1130 = vst [vmem:[%s340 + $0x78] sm:$0xff] %v1034
        %1131 = vst [vmem:[%s340 + $0x80] sm:$0xff] %v1035
        %1132 = vst [vmem:[%s340 + $0x88] sm:$0xff] %v1036
        %1133 = vst [vmem:[%s340 + $0x90] sm:$0xff] %v1037
        %1134 = vst [vmem:[%s340 + $0x98] sm:$0xff] %v1038
        %1135 = vst [vmem:[%s340 + $0xa0] sm:$0xff] %v1039
        %1136 = vst [vmem:[%s340 + $0xa8] sm:$0xff] %v1040
        %1137 = vst [vmem:[%s340 + $0xb0] sm:$0xff] %v1041
        %1138 = vst [vmem:[%s340 + $0xb8] sm:$0xff] %v1042
        %1139 = vst [vmem:[%s340 + $0xc0] sm:$0xff] %v1043
        %1140 = vst [vmem:[%s340 + $0xc8] sm:$0xff] %v1044
        %1141 = vst [vmem:[%s340 + $0xd0] sm:$0xff] %v1045
        %1142 = vst [vmem:[%s340 + $0xd8] sm:$0xff] %v1046
        %1143 = vst [vmem:[%s340 + $0xe0] sm:$0xff] %v1047
        %1144 = vst [vmem:[%s340 + $0xe8] sm:$0xff] %v1048
        %1145 = vst [vmem:[%s340 + $0xf0] sm:$0xff] %v1049
        %1146 = vst [vmem:[%s340 + $0xf8] sm:$0xff] %v1050
        %1147 = vst [vmem:[%s340 + $0x100] sm:$0xff] %v1051
        %1148 = vst [vmem:[%s340 + $0x108] sm:$0xff] %v1052
        %1149 = vst [vmem:[%s340 + $0x110] sm:$0xff] %v1053
        %1150 = vst [vmem:[%s340 + $0x118] sm:$0xff] %v1054
        %1151 = vst [vmem:[%s340 + $0x120] sm:$0xff] %v1055
        %1152 = vst [vmem:[%s340 + $0x128] sm:$0xff] %v1056
        %1153 = vst [vmem:[%s340 + $0x130] sm:$0xff] %v1057
        %1154 = vst [vmem:[%s340 + $0x138] sm:$0xff] %v1058
        %1155 = vst [vmem:[%s340 + $0x140] sm:$0xff] %v1059
        %1156 = vst [vmem:[%s340 + $0x148] sm:$0xff] %v1060
        %1157 = vst [vmem:[%s340 + $0x150] sm:$0xff] %v1061
        %1158 = vst [vmem:[%s340 + $0x158] sm:$0xff] %v1062
        %1159 = vst [vmem:[%s340 + $0x160] sm:$0xff] %v1063
        %1160 = vst [vmem:[%s340 + $0x168] sm:$0xff] %v1064
        %1161 = vst [vmem:[%s340 + $0x170] sm:$0xff] %v1065
        %1162 = vst [vmem:[%s340 + $0x178] sm:$0xff] %v1066
        %1163 = vst [vmem:[%s340 + $0x180] sm:$0xff] %v1067
        %1164 = vst [vmem:[%s340 + $0x188] sm:$0xff] %v1068
        %1165 = vst [vmem:[%s340 + $0x190] sm:$0xff] %v1069
        %1166 = vst [vmem:[%s340 + $0x198] sm:$0xff] %v1070
        %1167 = vst [vmem:[%s340 + $0x1a0] sm:$0xff] %v1071
        %1168 = vst [vmem:[%s340 + $0x1a8] sm:$0xff] %v1072
        %1169 = vst [vmem:[%s340 + $0x1b0] sm:$0xff] %v1073
        %1170 = vst [vmem:[%s340 + $0x1b8] sm:$0xff] %v1074
        %1171 = vst [vmem:[%s340 + $0x1c0] sm:$0xff] %v1075
        %1172 = vst [vmem:[%s340 + $0x1c8] sm:$0xff] %v1076
        %1173 = vst [vmem:[%s340 + $0x1d0] sm:$0xff] %v1077
        %1174 = vst [vmem:[%s340 + $0x1d8] sm:$0xff] %v1078
        %1175 = vst [vmem:[%s340 + $0x1e0] sm:$0xff] %v1079
        %1176 = vst [vmem:[%s340 + $0x1e8] sm:$0xff] %v1080
        %1177 = vst [vmem:[%s340 + $0x1f0] sm:$0xff] %v1081
        %1178 = vst [vmem:[%s340 + $0x1f8] sm:$0xff] %v1082
        %1179 = vst [vmem:[%s340 + $0x200] sm:$0xff] %v1083
        %1180 = vst [vmem:[%s340 + $0x208] sm:$0xff] %v1084
        %1181 = vst [vmem:[%s340 + $0x210] sm:$0xff] %v1085
        %1182 = vst [vmem:[%s340 + $0x218] sm:$0xff] %v1086
        %1183 = vst [vmem:[%s340 + $0x220] sm:$0xff] %v1087
        %1184 = vst [vmem:[%s340 + $0x228] sm:$0xff] %v1088
        %1185 = vst [vmem:[%s340 + $0x230] sm:$0xff] %v1089
        %1186 = vst [vmem:[%s340 + $0x238] sm:$0xff] %v1090
        %1187 = vst [vmem:[%s340 + $0x240] sm:$0xff] %v1091
        %1188 = vst [vmem:[%s340 + $0x248] sm:$0xff] %v1092
        %1189 = vst [vmem:[%s340 + $0x250] sm:$0xff] %v1093
        %1190 = vst [vmem:[%s340 + $0x258] sm:$0xff] %v1094
        %1191 = vst [vmem:[%s340 + $0x260] sm:$0xff] %v1095
        %1192 = vst [vmem:[%s340 + $0x268] sm:$0xff] %v1096
        %1193 = vst [vmem:[%s340 + $0x270] sm:$0xff] %v1097
        %1194 = vst [vmem:[%s340 + $0x278] sm:$0xff] %v1098
        %1195 = vst [vmem:[%s340 + $0x280] sm:$0xff] %v1099
        %1196 = vst [vmem:[%s340 + $0x288] sm:$0xff] %v1100
        %1197 = vst [vmem:[%s340 + $0x290] sm:$0xff] %v1101
        %1198 = vst [vmem:[%s340 + $0x298] sm:$0xff] %v1102
        %1199 = vst [vmem:[%s340 + $0x2a0] sm:$0xff] %v1103
        %1200 = vst [vmem:[%s340 + $0x2a8] sm:$0xff] %v1104
        %1201 = vst [vmem:[%s340 + $0x2b0] sm:$0xff] %v1105
        %1202 = vst [vmem:[%s340 + $0x2b8] sm:$0xff] %v1106
        %1203 = vst [vmem:[%s340 + $0x2c0] sm:$0xff] %v1107
        %1204 = vst [vmem:[%s340 + $0x2c8] sm:$0xff] %v1108
        %1205 = vst [vmem:[%s340 + $0x2d0] sm:$0xff] %v1109
        %1206 = vst [vmem:[%s340 + $0x2d8] sm:$0xff] %v1110
        %1207 = vst [vmem:[%s340 + $0x2e0] sm:$0xff] %v1111
        %1208 = vst [vmem:[%s340 + $0x2e8] sm:$0xff] %v1112
        %1209 = vst [vmem:[%s340 + $0x2f0] sm:$0xff] %v1113
        %1210 = vst [vmem:[%s340 + $0x2f8] sm:$0xff] %v1114
        %s1211 = sand.u32 %s115, 1
        %s1212 = scalar_lea.sflag [#allocation4], %s1211
        %s1213 = sand.u32 %s115, 1
        %s1214 = smul.addr %s1213, 768
        %s1215 = scalar_lea.vmem [#allocation8], %s1214
        %s1216 = sand.u32 %s29, 1
        %s1217 = scalar_lea.sflag [#allocation10], %s1216
        %s1218 = sand.u32 %s141, 1
        %s1219 = smul.addr %s1218, 768
        %s1220 = scalar_lea.vmem [#allocation9], %s1219
        %s1221 = sand.u32 %s29, 1
        %s1222 = scalar_lea.sflag [#allocation10], %s1221
        %s1223 = sand.u32 %s167, 1
        %s1224 = smul.addr %s1223, 768
        %s1225 = scalar_lea.vmem [#allocation11], %s1224
        // Predicated region
        $region45: #{tpu_custom_call.1} parent=31 // pred_check
          %p1226 = pneg %p125
        $region46: #{tpu_custom_call.1} parent=31 // pred_check_branch
          %1228 = sbr.rel (%p1226) target = $region48
        $region47: #{tpu_custom_call.1} parent=31 // pred_region
          %s1229 = smul.u32 12, %s29
          %s1231 = ssub.s32 12288, 12288
          %1232 = vsyncadd %s1212, %s1231
          %s1233 = smul.addr %s1229, 8
          %s1234 = smul.addr %s1233, 128
          %s1235 = scalar_lea.hbm %s3, %s1234
          %s1236 = sshll.u32 %s1215, 4
          %s1237 = int_to_ptr.vmem [resolvable:$true] %s1236
          %1242 = dma.vmem_to_hbm [thread:$0]  %s1237, 12288, %s1235, %s1212, 1024, 1024, 64
        $region48: #{tpu_custom_call.1} parent=31 // pred_fallthru
          _
        // Predicated region
        $region49: #{tpu_custom_call.1} parent=31 // pred_check
          %p1243 = pneg %p151
        $region50: #{tpu_custom_call.1} parent=31 // pred_check_branch
          %1245 = sbr.rel (%p1243) target = $region52
        $region51: #{tpu_custom_call.1} parent=31 // pred_region
          %s1246 = smul.u32 12, %s29
          %s1248 = ssub.s32 12288, 12288
          %1249 = vsyncadd %s1217, %s1248
          %s1250 = smul.addr %s1246, 8
          %s1251 = smul.addr %s1250, 128
          %s1252 = scalar_lea.hbm %s4, %s1251
          %s1253 = sshll.u32 %s1220, 4
          %s1254 = int_to_ptr.vmem [resolvable:$true] %s1253
          %1259 = dma.vmem_to_hbm [thread:$0]  %s1254, 12288, %s1252, %s1217, 1024, 1024, 64
        $region52: #{tpu_custom_call.1} parent=31 // pred_fallthru
          _
        // Predicated region
        $region53: #{tpu_custom_call.1} parent=31 // pred_check
          %p1260 = pneg %p177
        $region54: #{tpu_custom_call.1} parent=31 // pred_check_branch
          %1262 = sbr.rel (%p1260) target = $region56
        $region55: #{tpu_custom_call.1} parent=31 // pred_region
          %s1263 = smul.u32 12, %s29
          %s1265 = ssub.s32 12288, 12288
          %1266 = vsyncadd %s1222, %s1265
          %s1267 = smul.addr %s1263, 8
          %s1268 = smul.addr %s1267, 128
          %s1269 = scalar_lea.hbm %s5, %s1268
          %s1270 = sshll.u32 %s1225, 4
          %s1271 = int_to_ptr.vmem [resolvable:$true] %s1270
          %1276 = dma.vmem_to_hbm [thread:$0]  %s1271, 12288, %s1269, %s1222, 1024, 1024, 64
        $region56: #{tpu_custom_call.1} parent=31 // pred_fallthru
          _
      $region32: #{tpu_custom_call.1} parent=5 // pred_fallthru
        _
      %p1277 = scmp.le.s32.totalorder 2, %s24
      // Predicated region
      $region57: #{tpu_custom_call.1} parent=5 // pred_check
        %p1278 = pneg %p1277
      $region58: #{tpu_custom_call.1} parent=5 // pred_check_branch
        %1280 = sbr.rel (%p1278) target = $region60
      $region59: #{tpu_custom_call.1} parent=5 // pred_region
        %s1281 = ssub.s32 %s24, 2
        // Predicated region
        $region61: #{tpu_custom_call.1} parent=59 // pred_check
          %p1282 = pneg %p131
        $region62: #{tpu_custom_call.1} parent=59 // pred_check_branch
          %1284 = sbr.rel (%p1282) target = $region64
        $region63: #{tpu_custom_call.1} parent=59 // pred_region
          %s1285 = sand.u32 %s116, 1
          %s1286 = scalar_lea.sflag [#allocation4], %s1285
          %s1287 = sand.u32 %s116, 1
          %s1288 = smul.addr %s1287, 768
          %s1289 = scalar_lea.vmem [#allocation8], %s1288
          %1290 = dma.done %s1286, 12288
        $region64: #{tpu_custom_call.1} parent=59 // pred_fallthru
          _
        // Predicated region
        $region65: #{tpu_custom_call.1} parent=59 // pred_check
          %p1291 = pneg %p157
        $region66: #{tpu_custom_call.1} parent=59 // pred_check_branch
          %1293 = sbr.rel (%p1291) target = $region68
        $region67: #{tpu_custom_call.1} parent=59 // pred_region
          %s1294 = sand.u32 %s30, 1
          %s1295 = scalar_lea.sflag [#allocation10], %s1294
          %s1296 = sand.u32 %s142, 1
          %s1297 = smul.addr %s1296, 768
          %s1298 = scalar_lea.vmem [#allocation9], %s1297
          %1299 = dma.done %s1295, 12288
        $region68: #{tpu_custom_call.1} parent=59 // pred_fallthru
          _
        // Predicated region
        $region69: #{tpu_custom_call.1} parent=59 // pred_check
          %p1300 = pneg %p183
        $region70: #{tpu_custom_call.1} parent=59 // pred_check_branch
          %1302 = sbr.rel (%p1300) target = $region72
        $region71: #{tpu_custom_call.1} parent=59 // pred_region
          %s1303 = sand.u32 %s30, 1
          %s1304 = scalar_lea.sflag [#allocation10], %s1303
          %s1305 = sand.u32 %s168, 1
          %s1306 = smul.addr %s1305, 768
          %s1307 = scalar_lea.vmem [#allocation11], %s1306
          %1308 = dma.done %s1304, 12288
        $region72: #{tpu_custom_call.1} parent=59 // pred_fallthru
          _
      $region60: #{tpu_custom_call.1} parent=5 // pred_fallthru
        _
    $region6: #{tpu_custom_call.1} parent=1 // loop_footer
      %s28 = sadd.s32 1, %s24
    $region7: #{tpu_custom_call.1} parent=1 // loop_footer_branch
      %23 = sbr.rel target = $region3
    $region8: #{tpu_custom_call.1} parent=1 // loop_exit
      _
    %1309 = vsyncpa [#allocation3], 1
    %s1310 = scalar_lea.sflag [#allocation3], 1
    %1311 = vsyncpa %s1310, 1
    %1312 = vsyncpa [#allocation6], 1
    %s1313 = scalar_lea.sflag [#allocation6], 1
    %1314 = vsyncpa %s1313, 1
    %1315 = vsyncpa [#allocation4], 1
    %s1316 = scalar_lea.sflag [#allocation4], 1
    %1317 = vsyncpa %s1316, 1
    %1318 = vsyncpa [#allocation10], 1
    %s1319 = scalar_lea.sflag [#allocation10], 1
    %1320 = vsyncpa %s1319, 1

</llo_original>
